<compile_context>
chip_gen: v5e
topology: v5e:2x2
jax: 0.10.0
libtpu: 0.0.40
codegen_flags: <defaults>
</compile_context>

<pallas_src>
import functools

import jax
import jax.numpy as jnp
from jax.experimental import pallas as pl
from jax.experimental.pallas import tpu as pltpu

_LANE = 128      # lane width of a vreg (last dim)
_SUBLANE = 8     # sublane count of a vreg (second-to-last dim)
_MAX_ROW_TILE = 1024


def _round_up(n, m):
    return ((n + m - 1) // m) * m


def _qnet_kernel(x_ref, w1_ref, b1_ref, w2_ref, b2_ref, o_ref):
    # hidden = relu(x @ W1 + b1)   -- MXU matmul, f32 accumulation
    h = jnp.dot(x_ref[...], w1_ref[...], preferred_element_type=jnp.float32)
    h = jnp.maximum(h + b1_ref[...], 0.0)            # (TB, Hp) + (1, Hp)
    # out = hidden @ W2 + b2
    o = jnp.dot(h, w2_ref[...], preferred_element_type=jnp.float32)
    o_ref[...] = (o + b2_ref[...]).astype(o_ref.dtype)


def init_raw_params(key, input_size, hidden_size, output_size, dtype=jnp.float32):
    """PyTorch nn.Linear layout + default init: U(-1/sqrt(fan_in), 1/sqrt(fan_in))."""
    k1, k2, k3, k4 = jax.random.split(key, 4)
    bound1 = 1.0 / (input_size ** 0.5)
    bound2 = 1.0 / (hidden_size ** 0.5)
    w1 = jax.random.uniform(k1, (hidden_size, input_size), dtype, -bound1, bound1)
    b1 = jax.random.uniform(k2, (hidden_size,), dtype, -bound1, bound1)
    w2 = jax.random.uniform(k3, (output_size, hidden_size), dtype, -bound2, bound2)
    b2 = jax.random.uniform(k4, (output_size,), dtype, -bound2, bound2)
    return w1, b1, w2, b2


def pack_params(w1, b1, w2, b2):
    """One-time conversion to kernel layout.

    W1 -> (input_size, h_p): transposed; contraction dim kept at its natural
    width (so x needs no lane padding); hidden dim zero-padded to 128 lanes.
    W2 -> (h_p, o_p): transposed; padded hidden rows are exactly zero so the
    padded hidden lanes of the activation contribute nothing.
    Biases are (1, padded) rows.  (Optionally cast weights to bfloat16 here to
    halve weight DMA on v6e/v7x; the kernel's epilogue math stays f32.)
    """
    hidden_size, input_size = w1.shape
    output_size = w2.shape[0]
    h_p = _round_up(hidden_size, _LANE)
    o_p = _round_up(output_size, _LANE)
    dtype = w1.dtype

    w1_t = jnp.zeros((input_size, h_p), dtype).at[:, :hidden_size].set(w1.T)
    b1_p = jnp.zeros((1, h_p), dtype).at[0, :hidden_size].set(b1)
    w2_t = jnp.zeros((h_p, o_p), dtype).at[:hidden_size, :output_size].set(w2.T)
    b2_p = jnp.zeros((1, o_p), dtype).at[0, :output_size].set(b2)
    return {"w1": w1_t, "b1": b1_p, "w2": w2_t, "b2": b2_p}


@jax.jit
def linear_qnet_forward_padded(x, params):
    """Runs the fused kernel and returns the lane-dense padded output (b_p, o_p).

    Use this variant from a downstream jitted consumer (argmax / loss over the
    real output columns) to avoid an extra HBM round trip for the final slice.
    b_p = B rounded up to a multiple of 8; extra rows/lanes are don't-care.
    """
    B, in_size = x.shape
    w1, b1, w2, b2 = params["w1"], params["b1"], params["w2"], params["b2"]
    h_p = w1.shape[1]
    o_p = w2.shape[1]

    # Pad batch rows only (to a sublane multiple); lanes stay at natural width.
    b_p = _round_up(B, _SUBLANE)
    x_p = x if b_p == B else jnp.pad(x, ((0, b_p - B), (0, 0)))

    # Row tile: multiple of 8, capped at _MAX_ROW_TILE, and sized so large
    # batches split into >= 2 balanced tiles (keeps both v7x TCs busy).
    # Ragged last grid block (when tb doesn't divide b_p) is handled by Pallas:
    # OOB output rows are discarded and matmul rows never mix.
    tb = min(_MAX_ROW_TILE, _round_up(pl.cdiv(b_p, 2), _SUBLANE))
    grid = pl.cdiv(b_p, tb)

    return pl.pallas_call(
        _qnet_kernel,
        out_shape=jax.ShapeDtypeStruct((b_p, o_p), x.dtype),
        grid=(grid,),
        in_specs=[
            pl.BlockSpec((tb, in_size), lambda i: (i, 0)),    # x rows, natural lane width
            pl.BlockSpec((in_size, h_p), lambda i: (0, 0)),   # W1: VMEM-resident
            pl.BlockSpec((1, h_p), lambda i: (0, 0)),         # b1
            pl.BlockSpec((h_p, o_p), lambda i: (0, 0)),       # W2: VMEM-resident
            pl.BlockSpec((1, o_p), lambda i: (0, 0)),         # b2
        ],
        out_specs=pl.BlockSpec((tb, o_p), lambda i: (i, 0)),  # lane-dense store
        compiler_params=pltpu.CompilerParams(
            dimension_semantics=("parallel",),      # megacore-shard batch on v7x
            vmem_limit_bytes=32 * 1024 * 1024,      # never binding (~2.5 MiB @ tb=1024)
        ),
    )(x_p, w1, b1, w2, b2)


@functools.partial(jax.jit, static_argnames=("output_size",))
def linear_qnet_forward(x, params, *, output_size):
    """x: (B, input_size) f32 -> (B, output_size), matching Linear_QNet.forward.

    NOTE: for the B~1-8 action-selection path, cost is dominated by the fixed
    pallas_call launch + ~130 KiB weight DMA; batch several env steps per call
    (or use plain XLA there) and reserve this kernel for training batches.
    """
    out_p = linear_qnet_forward_padded(x, params)
    return out_p[: x.shape[0], :output_size]


if __name__ == "__main__":
    # Typical Linear_QNet config (snake agent): input=11, hidden=32, output=3; batch=2.
    B, INPUT, HIDDEN, OUTPUT = 2, 11, 32, 3

    key = jax.random.PRNGKey(0)
    kx, kp = jax.random.split(key)
    x = jax.random.normal(kx, (B, INPUT), jnp.float32)

    w1, b1, w2, b2 = init_raw_params(kp, INPUT, HIDDEN, OUTPUT)
    params = jax.tree_util.tree_map(jax.device_put, pack_params(w1, b1, w2, b2))

    out = jax.block_until_ready(linear_qnet_forward(x, params, output_size=OUTPUT))
    ref = jnp.maximum(x @ w1.T + b1, 0.0) @ w2.T + b2
    assert out.shape == (B, OUTPUT)
    assert jnp.allclose(out, ref, atol=1e-5, rtol=1e-5)

    # Multi-tile path: B=300 -> b_p=304, tb=152, grid=2 (exact blocks).
    xb = jax.random.normal(jax.random.PRNGKey(1), (300, INPUT), jnp.float32)
    outb = jax.block_until_ready(linear_qnet_forward(xb, params, output_size=OUTPUT))
    refb = jnp.maximum(xb @ w1.T + b1, 0.0) @ w2.T + b2
    assert outb.shape == (300, OUTPUT)
    assert jnp.allclose(outb, refb, atol=1e-4, rtol=1e-5)

    # Ragged last-block path: B=2200 -> tb=1024, grid=3 (blocks 1024/1024/152).
    xc = jax.random.normal(jax.random.PRNGKey(2), (2200, INPUT), jnp.float32)
    outc = jax.block_until_ready(linear_qnet_forward(xc, params, output_size=OUTPUT))
    refc = jnp.maximum(xc @ w1.T + b1, 0.0) @ w2.T + b2
    assert outc.shape == (2200, OUTPUT)
    assert jnp.allclose(outc, refc, atol=1e-4, rtol=1e-5)

    print("KERNEL_OK")
</pallas_src>

<mosaic_0001>
module attributes {stable_mosaic.version = 11 : i64} {
  func.func @_qnet_kernel(%arg0: i32, %arg1: memref<8x11xf32, #tpu.memory_space<vmem>>, %arg2: memref<11x128xf32, #tpu.memory_space<vmem>>, %arg3: memref<1x128xf32, #tpu.memory_space<vmem>>, %arg4: memref<128x128xf32, #tpu.memory_space<vmem>>, %arg5: memref<1x128xf32, #tpu.memory_space<vmem>>, %arg6: memref<8x128xf32, #tpu.memory_space<vmem>>) attributes {dimension_semantics = [#tpu.dimension_semantics<parallel>], iteration_bounds = array<i64: 1>, scalar_prefetch = 0 : i64, scratch_operands = 0 : i64, tpu.core_type = #tpu.core_type<tc>, window_params = [{transform_indices = @transform_0, window_bounds = array<i64: 8, 11>}, {pipeline_mode = #tpu.pipeline_mode<synchronous>, transform_indices = @transform_1, window_bounds = array<i64: 11, 128>}, {pipeline_mode = #tpu.pipeline_mode<synchronous>, transform_indices = @transform_2, window_bounds = array<i64: 1, 128>}, {pipeline_mode = #tpu.pipeline_mode<synchronous>, transform_indices = @transform_3, window_bounds = array<i64: 128, 128>}, {pipeline_mode = #tpu.pipeline_mode<synchronous>, transform_indices = @transform_4, window_bounds = array<i64: 1, 128>}, {transform_indices = @transform_5, window_bounds = array<i64: 8, 128>}]} {
    %c0 = arith.constant 0 : index
    %c0_0 = arith.constant 0 : index
    %0 = vector.load %arg1[%c0, %c0_0] : memref<8x11xf32, #tpu.memory_space<vmem>>, vector<8x11xf32>
    %c0_1 = arith.constant 0 : index
    %c0_2 = arith.constant 0 : index
    %1 = vector.load %arg2[%c0_1, %c0_2] : memref<11x128xf32, #tpu.memory_space<vmem>>, vector<11x128xf32>
    %cst = arith.constant dense<0.000000e+00> : vector<8x128xf32>
    %2 = tpu.matmul %0, %1, %cst {dimension_numbers = #tpu.dot_dimension_numbers<[1], [0], [0], [1], [0, 0, 1, 1], [], []>} : vector<8x11xf32>, vector<11x128xf32>, vector<8x128xf32> -> vector<8x128xf32>
    %c0_3 = arith.constant 0 : index
    %c0_4 = arith.constant 0 : index
    %3 = vector.load %arg3[%c0_3, %c0_4] : memref<1x128xf32, #tpu.memory_space<vmem>>, vector<1x128xf32>
    %4 = vector.broadcast %3 : vector<1x128xf32> to vector<8x128xf32>
    %5 = arith.addf %2, %4 : vector<8x128xf32>
    %cst_5 = arith.constant 0.000000e+00 : f32
    %6 = vector.broadcast %cst_5 : f32 to vector<8x128xf32>
    %7 = arith.maximumf %5, %6 : vector<8x128xf32>
    %c0_6 = arith.constant 0 : index
    %c0_7 = arith.constant 0 : index
    %8 = vector.load %arg4[%c0_6, %c0_7] : memref<128x128xf32, #tpu.memory_space<vmem>>, vector<128x128xf32>
    %cst_8 = arith.constant dense<0.000000e+00> : vector<8x128xf32>
    %9 = tpu.matmul %7, %8, %cst_8 {dimension_numbers = #tpu.dot_dimension_numbers<[1], [0], [0], [1], [0, 0, 1, 1], [], []>} : vector<8x128xf32>, vector<128x128xf32>, vector<8x128xf32> -> vector<8x128xf32>
    %c0_9 = arith.constant 0 : index
    %c0_10 = arith.constant 0 : index
    %10 = vector.load %arg5[%c0_9, %c0_10] : memref<1x128xf32, #tpu.memory_space<vmem>>, vector<1x128xf32>
    %11 = vector.broadcast %10 : vector<1x128xf32> to vector<8x128xf32>
    %12 = arith.addf %9, %11 : vector<8x128xf32>
    %c0_11 = arith.constant 0 : index
    %c0_12 = arith.constant 0 : index
    %13 = vector.load %arg6[%c0_11, %c0_12] : memref<8x128xf32, #tpu.memory_space<vmem>>, vector<8x128xf32>
    tpu.vector_store %arg6[%c0_11, %c0_12], %12 {strides = array<i32>} : memref<8x128xf32, #tpu.memory_space<vmem>>, vector<8x128xf32>,
    return
  }
  func.func @transform_0(%arg0: i32) -> (i32, i32) {
    %c0_i32 = arith.constant 0 : i32
    %c0_i32_0 = arith.constant 0 : i32
    return %arg0, %c0_i32 : i32, i32
  }
  func.func @transform_1(%arg0: i32) -> (i32, i32) {
    %c0_i32 = arith.constant 0 : i32
    %c0_i32_0 = arith.constant 0 : i32
    %c0_i32_1 = arith.constant 0 : i32
    return %c0_i32, %c0_i32_0 : i32, i32
  }
  func.func @transform_2(%arg0: i32) -> (i32, i32) {
    %c0_i32 = arith.constant 0 : i32
    %c0_i32_0 = arith.constant 0 : i32
    %c0_i32_1 = arith.constant 0 : i32
    return %c0_i32, %c0_i32_0 : i32, i32
  }
  func.func @transform_3(%arg0: i32) -> (i32, i32) {
    %c0_i32 = arith.constant 0 : i32
    %c0_i32_0 = arith.constant 0 : i32
    %c0_i32_1 = arith.constant 0 : i32
    return %c0_i32, %c0_i32_0 : i32, i32
  }
  func.func @transform_4(%arg0: i32) -> (i32, i32) {
    %c0_i32 = arith.constant 0 : i32
    %c0_i32_0 = arith.constant 0 : i32
    %c0_i32_1 = arith.constant 0 : i32
    return %c0_i32, %c0_i32_0 : i32, i32
  }
  func.func @transform_5(%arg0: i32) -> (i32, i32) {
    %c0_i32 = arith.constant 0 : i32
    %c0_i32_0 = arith.constant 0 : i32
    return %arg0, %c0_i32 : i32, i32
  }
}

</mosaic_0001>

<llo_original>
// kernel: linear_qnet_forward_padded.1
$region0: #{linear_qnet_forward_padded.1}
  #allocation0 [shape = 'u32[]', space=smem, size = 0x4, offset = 0x4, fixed_abs, tag = 'smem constant byte address 0x4 - core index']
  #allocation1 [shape = 'u32[72,128]{1,0:T(1,128)}', space=vmem, size = 0x9000, scoped, tag = 'internal scratch']
  %s0 = inlined_call_operand.vmem [shape: f32[8,11], index: 0, kind: input, shape index: {}]
  %s1 = inlined_call_operand.hbm [shape: f32[11,128], index: 1, kind: input, shape index: {}]
  %s2 = inlined_call_operand.vmem [shape: f32[1,128], index: 2, kind: input, shape index: {}]
  %s3 = inlined_call_operand.hbm [shape: f32[128,128], index: 3, kind: input, shape index: {}]
  %s4 = inlined_call_operand.vmem [shape: f32[1,128], index: 4, kind: input, shape index: {}]
  %s5 = inlined_call_operand.hbm [shape: f32[8,128], index: 5, kind: output, shape index: {}]
  %s6 = sld [smem:[#allocation0]]
  $region38: #{linear_qnet_forward_padded.1} parent=0
    _
  %s8 = ssub.s32 1, %s6
  %s9 = scalar_select 0, %s8, %s6
  $region1: #{linear_qnet_forward_padded.1} parent=0
    #allocation2 [shape = 'u8[8192]{0}', space=vmem, size = 0x2000, scoped, tag = 'input window, operand 1, single buffered']
    #allocation3 [shape = 's32[1]{0}', space=sflag, size = 0x4, scoped, tag = 'scoped memory for linear_qnet_forward_padded.1']
    #allocation4 [shape = 's32[1]{0}', space=sflag, size = 0x4, scoped, tag = 'scoped memory for linear_qnet_forward_padded.1']
    #allocation5 [shape = 'u8[65536]{0}', space=vmem, size = 0x10000, scoped, tag = 'input window, operand 3, single buffered']
    #allocation6 [shape = 's32[1]{0}', space=sflag, size = 0x4, scoped, tag = 'scoped memory for linear_qnet_forward_padded.1']
    #allocation7 [shape = 'u8[4096]{0}', space=vmem, size = 0x1000, scoped, tag = 'output window, operand 0, single buffered']
    %10 = vsyncpa [#allocation3], 0
    %11 = vsyncpa [#allocation6], 0
    %12 = vsyncpa [#allocation4], 0
    // Predicated region
    $region2: #{linear_qnet_forward_padded.1} parent=1 // pred_check
      _
    $region3: #{linear_qnet_forward_padded.1} parent=1 // pred_check_branch
      %14 = sbr.rel (0) target = $region5
    $region4: #{linear_qnet_forward_padded.1} parent=1 // pred_region
      _
    $region5: #{linear_qnet_forward_padded.1} parent=1 // pred_fallthru
      _
    // Predicated region
    $region6: #{linear_qnet_forward_padded.1} parent=1 // pred_check
      _
    $region7: #{linear_qnet_forward_padded.1} parent=1 // pred_check_branch
      %16 = sbr.rel (0) target = $region9
    $region8: #{linear_qnet_forward_padded.1} parent=1 // pred_region
      %18 = vsyncadd [#allocation3], 0
      %s19 = sshll.u32 %s1, 4
      %s20 = int_to_ptr.hbm [resolvable:$true] %s19
      %s21 = sshll.u32 [#allocation2], 4
      %s22 = int_to_ptr.vmem [resolvable:$true] %s21
      %27 = dma.hbm_to_vmem [thread:$0]  %s20, 256, %s22, [#allocation3], 128, 128, 8
    $region9: #{linear_qnet_forward_padded.1} parent=1 // pred_fallthru
      _
    // Predicated region
    $region10: #{linear_qnet_forward_padded.1} parent=1 // pred_check
      _
    $region11: #{linear_qnet_forward_padded.1} parent=1 // pred_check_branch
      %29 = sbr.rel (0) target = $region13
    $region12: #{linear_qnet_forward_padded.1} parent=1 // pred_region
      _
    $region13: #{linear_qnet_forward_padded.1} parent=1 // pred_fallthru
      _
    // Predicated region
    $region14: #{linear_qnet_forward_padded.1} parent=1 // pred_check
      _
    $region15: #{linear_qnet_forward_padded.1} parent=1 // pred_check_branch
      %31 = sbr.rel (0) target = $region17
    $region16: #{linear_qnet_forward_padded.1} parent=1 // pred_region
      %33 = vsyncadd [#allocation6], 0
      %s34 = sshll.u32 %s3, 4
      %s35 = int_to_ptr.hbm [resolvable:$true] %s34
      %s36 = sshll.u32 [#allocation5], 4
      %s37 = int_to_ptr.vmem [resolvable:$true] %s36
      %42 = dma.hbm_to_vmem [thread:$0]  %s35, 2048, %s37, [#allocation6], 128, 128, 8
    $region17: #{linear_qnet_forward_padded.1} parent=1 // pred_fallthru
      _
    // Predicated region
    $region18: #{linear_qnet_forward_padded.1} parent=1 // pred_check
      _
    $region19: #{linear_qnet_forward_padded.1} parent=1 // pred_check_branch
      %44 = sbr.rel (0) target = $region21
    $region20: #{linear_qnet_forward_padded.1} parent=1 // pred_region
      _
    $region21: #{linear_qnet_forward_padded.1} parent=1 // pred_fallthru
      _
    // Predicated region
    $region22: #{linear_qnet_forward_padded.1} parent=1 // pred_check
      _
    $region23: #{linear_qnet_forward_padded.1} parent=1 // pred_check_branch
      %46 = sbr.rel (0) target = $region25
    $region24: #{linear_qnet_forward_padded.1} parent=1 // pred_region
      %48 = dma.done [#allocation3], 256
    $region25: #{linear_qnet_forward_padded.1} parent=1 // pred_fallthru
      _
    // Predicated region
    $region26: #{linear_qnet_forward_padded.1} parent=1 // pred_check
      _
    $region27: #{linear_qnet_forward_padded.1} parent=1 // pred_check_branch
      %50 = sbr.rel (0) target = $region29
    $region28: #{linear_qnet_forward_padded.1} parent=1 // pred_region
      %52 = dma.done [#allocation6], 2048
    $region29: #{linear_qnet_forward_padded.1} parent=1 // pred_fallthru
      _
    %v53 = vld [vmem:[%s0] sm:$0xff]
    %v54 = vld [vmem:[#allocation2] sm:$0xff]
    %v55 = vld [vmem:[#allocation2 + $0x8] sm:$0x7]
    %v56 = vld [vmem:[%s2] sm:$0x1]
    %v58 = vperm.slane %v56, 0
    %vm60 = vcmask 89088
    %v62 = vsel %vm60, %v53, 0
    %vm64 = vcmask 1042432
    %v66 = vsel %vm64, %v55, 0
    %68 = vmatpush.msra.mxu0 0.0
    %69 = vmatpush.msra.mxu0 0.0
    %70 = vmatpush.msra.mxu0 0.0
    %71 = vmatpush.msra.mxu0 0.0
    %72 = vmatpush.msra.mxu0 0.0
    %73 = vmatpush.msra.mxu0 0.0
    %74 = vmatpush.msra.mxu0 0.0
    %75 = vmatpush.msra.mxu0 0.0
    %76 = vmatpush.msra.mxu0 0.0
    %77 = vmatpush.msra.mxu0 0.0
    %78 = vmatpush.msra.mxu0 0.0
    %79 = vmatpush.msra.mxu0 0.0
    %80 = vmatpush.msra.mxu0 0.0
    %81 = vmatpush.msra.mxu0 0.0
    %82 = vmatpush.msra.mxu0 %v66
    %83 = vmatpush.msra.mxu0 %v54
    %84 = vmatmul.f32.gmra.mxu0 %v62
    %v85 = vpop.f32.mrf.mxu0
    %v86 = vadd.f32 %v58, %v85
    %87 = vdwg.mxu0
    %v88 = vmax.f32 %v86, 0.0
    %v89 = vld [vmem:[#allocation5] sm:$0xff]
    %v90 = vld [vmem:[#allocation5 + $0x8] sm:$0xff]
    %v91 = vld [vmem:[#allocation5 + $0x10] sm:$0xff]
    %v92 = vld [vmem:[#allocation5 + $0x18] sm:$0xff]
    %v93 = vld [vmem:[#allocation5 + $0x20] sm:$0xff]
    %v94 = vld [vmem:[#allocation5 + $0x28] sm:$0xff]
    %v95 = vld [vmem:[#allocation5 + $0x30] sm:$0xff]
    %v96 = vld [vmem:[#allocation5 + $0x38] sm:$0xff]
    %v97 = vld [vmem:[#allocation5 + $0x40] sm:$0xff]
    %v98 = vld [vmem:[#allocation5 + $0x48] sm:$0xff]
    %v99 = vld [vmem:[#allocation5 + $0x50] sm:$0xff]
    %v100 = vld [vmem:[#allocation5 + $0x58] sm:$0xff]
    %v101 = vld [vmem:[#allocation5 + $0x60] sm:$0xff]
    %v102 = vld [vmem:[#allocation5 + $0x68] sm:$0xff]
    %v103 = vld [vmem:[#allocation5 + $0x70] sm:$0xff]
    %v104 = vld [vmem:[#allocation5 + $0x78] sm:$0xff]
    %v105 = vld [vmem:[%s4] sm:$0x1]
    %v107 = vperm.slane %v105, 0
    %109 = vmatpush.msra.mxu0 %v104
    %110 = vmatpush.msra.mxu0 %v103
    %111 = vmatpush.msra.mxu0 %v102
    %112 = vmatpush.msra.mxu0 %v101
    %113 = vmatpush.msra.mxu0 %v100
    %114 = vmatpush.msra.mxu0 %v99
    %115 = vmatpush.msra.mxu0 %v98
    %116 = vmatpush.msra.mxu0 %v97
    %117 = vmatpush.msra.mxu0 %v96
    %118 = vmatpush.msra.mxu0 %v95
    %119 = vmatpush.msra.mxu0 %v94
    %120 = vmatpush.msra.mxu0 %v93
    %121 = vmatpush.msra.mxu0 %v92
    %122 = vmatpush.msra.mxu0 %v91
    %123 = vmatpush.msra.mxu0 %v90
    %124 = vmatpush.msra.mxu0 %v89
    %125 = vmatmul.f32.gmra.mxu0 %v88
    %v126 = vpop.f32.mrf.mxu0
    %v127 = vadd.f32 %v107, %v126
    %128 = vdwg.mxu0
    %129 = vst [vmem:[#allocation7] sm:$0xff] %v127
    // Predicated region
    $region30: #{linear_qnet_forward_padded.1} parent=1 // pred_check
      _
    $region31: #{linear_qnet_forward_padded.1} parent=1 // pred_check_branch
      %131 = sbr.rel (0) target = $region33
    $region32: #{linear_qnet_forward_padded.1} parent=1 // pred_region
      %133 = vsyncadd [#allocation4], 0
      %s135 = sshll.u32 [#allocation7], 4
      %s136 = int_to_ptr.vmem [resolvable:$true] %s135
      %s137 = sshll.u32 %s5, 4
      %s138 = int_to_ptr.hbm [resolvable:$true] %s137
      %140 = dma.vmem_to_hbm [thread:$0]  %s136, 128, %s138, [#allocation4]
    $region33: #{linear_qnet_forward_padded.1} parent=1 // pred_fallthru
      _
    // Predicated region
    $region34: #{linear_qnet_forward_padded.1} parent=1 // pred_check
      _
    $region35: #{linear_qnet_forward_padded.1} parent=1 // pred_check_branch
      %142 = sbr.rel (0) target = $region37
    $region36: #{linear_qnet_forward_padded.1} parent=1 // pred_region
      %144 = dma.done [#allocation4], 128
    $region37: #{linear_qnet_forward_padded.1} parent=1 // pred_fallthru
      _
    %145 = vsyncpa [#allocation3], 1
    %146 = vsyncpa [#allocation6], 1
    %147 = vsyncpa [#allocation4], 1

</llo_original>
